<compile_context>
chip_gen: v7x
topology: tpu7x:2x2x1
jax: 0.10.0
libtpu: 0.0.40
codegen_flags: <defaults>
</compile_context>

<pallas_src>
import functools

import jax
import jax.numpy as jnp
from jax.experimental import pallas as pl
from jax.experimental.pallas import tpu as pltpu


# ----------------------------- Pallas kernels ------------------------------

def pca_transform_kernel_single(x_ref, w_ref, b_ref, o_ref):
    # Whole contraction dimension in one tile: no scratch, direct store.
    # x_ref: (TM, Dp)  w_ref: (Dp, Kp)  b_ref: (1, Kp)  o_ref: (TM, Kp)
    acc = jnp.dot(x_ref[...], w_ref[...], preferred_element_type=jnp.float32)
    o_ref[...] = (acc - b_ref[...]).astype(o_ref.dtype)


def pca_transform_kernel_reduce(x_ref, w_ref, b_ref, o_ref, acc_ref):
    # x_ref:   (TM, TD)     VMEM   tile of X
    # w_ref:   (TD, Kp)     VMEM   tile of components_.T (pre-transposed)
    # b_ref:   (1,  Kp)     VMEM   bias = mean_ @ components_.T (resident)
    # o_ref:   (TM, Kp)     VMEM   output tile (same block across D axis)
    # acc_ref: (TM, Kp)     VMEM   float32 accumulator scratch
    j = pl.program_id(1)  # contraction (D) grid axis, last

    @pl.when(j == 0)
    def _():
        acc_ref[...] = jnp.zeros_like(acc_ref)

    acc_ref[...] += jnp.dot(x_ref[...], w_ref[...],
                            preferred_element_type=jnp.float32)

    @pl.when(j == pl.num_programs(1) - 1)
    def _():
        o_ref[...] = (acc_ref[...] - b_ref[...]).astype(o_ref.dtype)


# ------------------------------- wrapper -----------------------------------

def _round_up(x, m):
    return ((x + m - 1) // m) * m


@functools.partial(jax.jit, static_argnames=("tm", "td"))
def pca_transform(x, mean_, components_, *, tm=512, td=1024):
    """Pallas implementation of PCA.transform / PCA.forward.

    Computes (x - mean_) @ components_.T as x @ W - bias with
    W = components_.T and bias = mean_ @ W (numerically equivalent up to
    f32 rounding).
    """
    n, d = x.shape
    k, d2 = components_.shape
    assert d == d2 and mean_.shape == (1, d)

    # Fit-time constants reshaped once in the wrapper (no in-kernel transpose).
    w = components_.T                       # [D, K]
    bias = mean_ @ w                        # [1, K]

    # Lane-dense output columns; tile sizes respect the (8, 128) rule.
    k_pad = _round_up(k, 128)
    tm_eff = min(tm, _round_up(n, 8))
    td_eff = min(td, _round_up(d, 128))
    n_pad = _round_up(n, tm_eff)
    d_pad = _round_up(d, td_eff)

    x_p = jnp.pad(x, ((0, n_pad - n), (0, d_pad - d)))
    w_p = jnp.pad(w, ((0, d_pad - d), (0, k_pad - k)))
    b_p = jnp.pad(bias, ((0, 0), (0, k_pad - k)))

    n_row_tiles = n_pad // tm_eff
    n_d_tiles = d_pad // td_eff

    cost = pl.CostEstimate(
        flops=2 * n_pad * d_pad * k_pad,
        transcendentals=0,
        bytes_accessed=4 * (n_pad * d_pad + d_pad * k_pad + n_pad * k_pad))

    if n_d_tiles == 1:
        # Whole contraction in VMEM: no accumulator, single-pass kernel.
        out = pl.pallas_call(
            pca_transform_kernel_single,
            out_shape=jax.ShapeDtypeStruct((n_pad, k_pad), x.dtype),
            grid_spec=pltpu.PrefetchScalarGridSpec(
                num_scalar_prefetch=0,
                grid=(n_row_tiles,),
                in_specs=[
                    pl.BlockSpec((tm_eff, d_pad), lambda i: (i, 0)),
                    # W / bias constant across row tiles -> VMEM-resident.
                    pl.BlockSpec((d_pad, k_pad), lambda i: (0, 0)),
                    pl.BlockSpec((1, k_pad), lambda i: (0, 0)),
                ],
                out_specs=pl.BlockSpec((tm_eff, k_pad), lambda i: (i, 0)),
            ),
            compiler_params=pltpu.CompilerParams(
                dimension_semantics=("parallel",)),
            cost_estimate=cost,
        )(x_p, w_p, b_p)
    else:
        out = pl.pallas_call(
            pca_transform_kernel_reduce,
            out_shape=jax.ShapeDtypeStruct((n_pad, k_pad), x.dtype),
            grid_spec=pltpu.PrefetchScalarGridSpec(
                num_scalar_prefetch=0,
                grid=(n_row_tiles, n_d_tiles),
                in_specs=[
                    # X: streamed tile-by-tile over both grid axes.
                    pl.BlockSpec((tm_eff, td_eff), lambda i, j: (i, j)),
                    # W: depends only on the D axis -> resident across rows.
                    pl.BlockSpec((td_eff, k_pad), lambda i, j: (j, 0)),
                    # bias: constant -> fully resident.
                    pl.BlockSpec((1, k_pad), lambda i, j: (0, 0)),
                ],
                # Same output block across the D reduction axis (accumulator).
                out_specs=pl.BlockSpec((tm_eff, k_pad), lambda i, j: (i, 0)),
                scratch_shapes=[pltpu.VMEM((tm_eff, k_pad), jnp.float32)],
            ),
            compiler_params=pltpu.CompilerParams(
                dimension_semantics=("parallel", "arbitrary")),
            cost_estimate=cost,
        )(x_p, w_p, b_p)

    return out[:n, :k]


# --------------------------- fit (plain-JAX glue) ---------------------------

def svd_flip_u_based(u, vt):
    # Mirror of the PyTorch svd_flip with u_based_decision=True.
    max_abs_cols = jnp.argmax(jnp.abs(u.T), axis=1)
    i = jnp.arange(u.T.shape[0])
    signs = jnp.sign(u[max_abs_cols, i])
    u = u * signs
    vt = vt * signs[:, None]
    return u, vt


def pca_fit(x, n_components):
    """Parameter setup (not the hot path) done in plain JAX, deterministically."""
    n, d = x.shape
    k = min(n_components, d) if n_components is not None else d
    mean_ = jnp.mean(x, axis=0, keepdims=True)            # [1, D]
    z = x - mean_
    u, s, vh = jnp.linalg.svd(z, full_matrices=False)
    u, vt = svd_flip_u_based(u, vh)
    components_ = vt[:k]                                   # [K, D]
    return mean_, components_


# ---------------------------------- main -----------------------------------

if __name__ == "__main__":
    key = jax.random.PRNGKey(0)
    N, D, K = 16, 32, 4                                    # small, forward-consistent shapes

    x_fit = jax.random.normal(key, (N, D), dtype=jnp.float32)
    mean_, components_ = pca_fit(x_fit, n_components=K)

    x = jax.random.normal(jax.random.fold_in(key, 1), (N, D), dtype=jnp.float32)

    y = pca_transform(x, mean_, components_)
    y = jax.block_until_ready(y)

    # reference check against plain-JAX forward: (X - mean) @ components.T
    y_ref = (x - mean_) @ components_.T
    assert y.shape == (N, K)
    assert jnp.allclose(y, y_ref, atol=1e-4, rtol=1e-4)

    print("KERNEL_OK")
</pallas_src>

<mosaic_0001>
module attributes {stable_mosaic.version = 11 : i64} {
  func.func @pca_transform_kernel_single(%arg0: i32, %arg1: memref<16x128xf32, #tpu.memory_space<vmem>>, %arg2: memref<128x128xf32, #tpu.memory_space<vmem>>, %arg3: memref<1x128xf32, #tpu.memory_space<vmem>>, %arg4: memref<16x128xf32, #tpu.memory_space<vmem>>) attributes {dimension_semantics = [#tpu.dimension_semantics<parallel>], iteration_bounds = array<i64: 1>, scalar_prefetch = 0 : i64, scratch_operands = 0 : i64, tpu.core_type = #tpu.core_type<tc>, window_params = [{transform_indices = @transform_0, window_bounds = array<i64: 16, 128>}, {pipeline_mode = #tpu.pipeline_mode<synchronous>, transform_indices = @transform_1, window_bounds = array<i64: 128, 128>}, {pipeline_mode = #tpu.pipeline_mode<synchronous>, transform_indices = @transform_2, window_bounds = array<i64: 1, 128>}, {transform_indices = @transform_3, window_bounds = array<i64: 16, 128>}]} {
    %c0 = arith.constant 0 : index
    %c0_0 = arith.constant 0 : index
    %0 = vector.load %arg1[%c0, %c0_0] : memref<16x128xf32, #tpu.memory_space<vmem>>, vector<16x128xf32>
    %c0_1 = arith.constant 0 : index
    %c0_2 = arith.constant 0 : index
    %1 = vector.load %arg2[%c0_1, %c0_2] : memref<128x128xf32, #tpu.memory_space<vmem>>, vector<128x128xf32>
    %cst = arith.constant dense<0.000000e+00> : vector<16x128xf32>
    %2 = tpu.matmul %0, %1, %cst {dimension_numbers = #tpu.dot_dimension_numbers<[1], [0], [0], [1], [0, 0, 1, 1], [], []>} : vector<16x128xf32>, vector<128x128xf32>, vector<16x128xf32> -> vector<16x128xf32>
    %c0_3 = arith.constant 0 : index
    %c0_4 = arith.constant 0 : index
    %3 = vector.load %arg3[%c0_3, %c0_4] : memref<1x128xf32, #tpu.memory_space<vmem>>, vector<1x128xf32>
    %4 = vector.broadcast %3 : vector<1x128xf32> to vector<16x128xf32>
    %5 = arith.subf %2, %4 : vector<16x128xf32>
    %c0_5 = arith.constant 0 : index
    %c0_6 = arith.constant 0 : index
    %6 = vector.load %arg4[%c0_5, %c0_6] : memref<16x128xf32, #tpu.memory_space<vmem>>, vector<16x128xf32>
    tpu.vector_store %arg4[%c0_5, %c0_6], %5 {strides = array<i32>} : memref<16x128xf32, #tpu.memory_space<vmem>>, vector<16x128xf32>,
    return
  }
  func.func @transform_0(%arg0: i32) -> (i32, i32) {
    %c0_i32 = arith.constant 0 : i32
    %c0_i32_0 = arith.constant 0 : i32
    return %arg0, %c0_i32 : i32, i32
  }
  func.func @transform_1(%arg0: i32) -> (i32, i32) {
    %c0_i32 = arith.constant 0 : i32
    %c0_i32_0 = arith.constant 0 : i32
    %c0_i32_1 = arith.constant 0 : i32
    return %c0_i32, %c0_i32_0 : i32, i32
  }
  func.func @transform_2(%arg0: i32) -> (i32, i32) {
    %c0_i32 = arith.constant 0 : i32
    %c0_i32_0 = arith.constant 0 : i32
    %c0_i32_1 = arith.constant 0 : i32
    return %c0_i32, %c0_i32_0 : i32, i32
  }
  func.func @transform_3(%arg0: i32) -> (i32, i32) {
    %c0_i32 = arith.constant 0 : i32
    %c0_i32_0 = arith.constant 0 : i32
    return %arg0, %c0_i32 : i32, i32
  }
}

</mosaic_0001>

<llo_original>
// kernel: pca_transform.1
$region0: #{pca_transform.1}
  #allocation0 [shape = 'u32[]', space=smem, size = 0x4, offset = 0x4, fixed_abs, tag = 'smem constant byte address 0x4 - core index']
  #allocation1 [shape = 'u32[144,128]{1,0:T(1,128)}', space=vmem, size = 0x12000, scoped, tag = 'internal scratch']
  %s0 = inlined_call_operand.vmem [shape: f32[16,128], index: 0, kind: input, shape index: {}]
  %s1 = inlined_call_operand.vmem [shape: f32[128,128], index: 1, kind: input, shape index: {}]
  %s2 = inlined_call_operand.vmem [shape: f32[1,128], index: 2, kind: input, shape index: {}]
  %s3 = inlined_call_operand.vmem [shape: f32[16,128], index: 3, kind: output, shape index: {}]
  %s4 = sld [smem:[#allocation0]]
  $region22: #{pca_transform.1} parent=0
    _
  %s6 = ssub.s32 1, %s4
  %s7 = scalar_select 0, %s6, %s4
  // Predicated region
  $region2: #{pca_transform.1} parent=0 // pred_check
    _
  $region3: #{pca_transform.1} parent=0 // pred_check_branch
    %9 = sbr.rel (0) target = $region5
  $region4: #{pca_transform.1} parent=0 // pred_region
    _
  $region5: #{pca_transform.1} parent=0 // pred_fallthru
    _
  // Predicated region
  $region6: #{pca_transform.1} parent=0 // pred_check
    _
  $region7: #{pca_transform.1} parent=0 // pred_check_branch
    %11 = sbr.rel (0) target = $region9
  $region8: #{pca_transform.1} parent=0 // pred_region
    _
  $region9: #{pca_transform.1} parent=0 // pred_fallthru
    _
  // Predicated region
  $region10: #{pca_transform.1} parent=0 // pred_check
    _
  $region11: #{pca_transform.1} parent=0 // pred_check_branch
    %13 = sbr.rel (0) target = $region13
  $region12: #{pca_transform.1} parent=0 // pred_region
    _
  $region13: #{pca_transform.1} parent=0 // pred_fallthru
    _
  %v14 = vld [vmem:[%s0] sm:$0xff]
  %v15 = vld [vmem:[%s0 + $0x8] sm:$0xff]
  %v16 = vld [vmem:[%s1] sm:$0xff]
  %v17 = vld [vmem:[%s1 + $0x8] sm:$0xff]
  %v18 = vld [vmem:[%s1 + $0x10] sm:$0xff]
  %v19 = vld [vmem:[%s1 + $0x18] sm:$0xff]
  %v20 = vld [vmem:[%s1 + $0x20] sm:$0xff]
  %v21 = vld [vmem:[%s1 + $0x28] sm:$0xff]
  %v22 = vld [vmem:[%s1 + $0x30] sm:$0xff]
  %v23 = vld [vmem:[%s1 + $0x38] sm:$0xff]
  %v24 = vld [vmem:[%s1 + $0x40] sm:$0xff]
  %v25 = vld [vmem:[%s1 + $0x48] sm:$0xff]
  %v26 = vld [vmem:[%s1 + $0x50] sm:$0xff]
  %v27 = vld [vmem:[%s1 + $0x58] sm:$0xff]
  %v28 = vld [vmem:[%s1 + $0x60] sm:$0xff]
  %v29 = vld [vmem:[%s1 + $0x68] sm:$0xff]
  %v30 = vld [vmem:[%s1 + $0x70] sm:$0xff]
  %v31 = vld [vmem:[%s1 + $0x78] sm:$0xff]
  %32 = vmatprep.subr.mxu0 0.0
  %33 = vmatpush1.msra.mxu0 %v16
  %34 = vmatprep.subr.mxu0 0.0
  %35 = vmatpush1.msra.mxu0 %v17
  %36 = vmatprep.subr.mxu0 0.0
  %37 = vmatpush1.msra.mxu0 %v18
  %38 = vmatprep.subr.mxu0 0.0
  %39 = vmatpush1.msra.mxu0 %v19
  %40 = vmatprep.subr.mxu0 0.0
  %41 = vmatpush1.msra.mxu0 %v20
  %42 = vmatprep.subr.mxu0 0.0
  %43 = vmatpush1.msra.mxu0 %v21
  %44 = vmatprep.subr.mxu0 0.0
  %45 = vmatpush1.msra.mxu0 %v22
  %46 = vmatprep.subr.mxu0 0.0
  %47 = vmatpush1.msra.mxu0 %v23
  %48 = vmatprep.subr.mxu0 0.0
  %49 = vmatpush1.msra.mxu0 %v24
  %50 = vmatprep.subr.mxu0 0.0
  %51 = vmatpush1.msra.mxu0 %v25
  %52 = vmatprep.subr.mxu0 0.0
  %53 = vmatpush1.msra.mxu0 %v26
  %54 = vmatprep.subr.mxu0 0.0
  %55 = vmatpush1.msra.mxu0 %v27
  %56 = vmatprep.subr.mxu0 0.0
  %57 = vmatpush1.msra.mxu0 %v28
  %58 = vmatprep.subr.mxu0 0.0
  %59 = vmatpush1.msra.mxu0 %v29
  %60 = vmatprep.subr.mxu0 0.0
  %61 = vmatpush1.msra.mxu0 %v30
  %62 = vmatprep.subr.mxu0 0.0
  %63 = vmatpush1.msra.mxu0 %v31
  %64 = vmatprep.subr.mxu0 0.0
  %65 = vmatpush1.msra.mxu0 0.0
  %66 = vmatprep.subr.mxu0 0.0
  %67 = vmatpush1.msra.mxu0 0.0
  %68 = vmatprep.subr.mxu0 0.0
  %69 = vmatpush1.msra.mxu0 0.0
  %70 = vmatprep.subr.mxu0 0.0
  %71 = vmatpush1.msra.mxu0 0.0
  %72 = vmatprep.subr.mxu0 0.0
  %73 = vmatpush1.msra.mxu0 0.0
  %74 = vmatprep.subr.mxu0 0.0
  %75 = vmatpush1.msra.mxu0 0.0
  %76 = vmatprep.subr.mxu0 0.0
  %77 = vmatpush1.msra.mxu0 0.0
  %78 = vmatprep.subr.mxu0 0.0
  %79 = vmatpush1.msra.mxu0 0.0
  %80 = vmatprep.subr.mxu0 0.0
  %81 = vmatpush1.msra.mxu0 0.0
  %82 = vmatprep.subr.mxu0 0.0
  %83 = vmatpush1.msra.mxu0 0.0
  %84 = vmatprep.subr.mxu0 0.0
  %85 = vmatpush1.msra.mxu0 0.0
  %86 = vmatprep.subr.mxu0 0.0
  %87 = vmatpush1.msra.mxu0 0.0
  %88 = vmatprep.subr.mxu0 0.0
  %89 = vmatpush1.msra.mxu0 0.0
  %90 = vmatprep.subr.mxu0 0.0
  %91 = vmatpush1.msra.mxu0 0.0
  %92 = vmatprep.subr.mxu0 0.0
  %93 = vmatpush1.msra.mxu0 0.0
  %94 = vmatprep.subr.mxu0 0.0
  %95 = vmatpush1.msra.mxu0 0.0
  %96 = vmatprep.mubr.f32.mxu0 0.0
  %97 = vmatmul.mubr.f32.gmra.mrb[0].mxu0 %v14
  %v98 = vpop.f32.mrb[0].mxu0
  %v99 = vadd.f32 0.0, %v98
  %v100 = vpop.f32.mrb[0].mxu0
  %101 = vmatprep.mubr.f32.mxu0 0.0
  %102 = vmatmul.mubr.f32.gmra.mrb[0].mxu0 %v15
  %v103 = vpop.f32.mrb[0].mxu0
  %v104 = vadd.f32 0.0, %v103
  %v105 = vpop.f32.mrb[0].mxu0
  %106 = vdwg.mxu0
  %v107 = vld [vmem:[%s2] sm:$0x1]
  %v109 = vlaneseq
  %v110 = vshrl.u32 %v109, 7
  %v111 = vsub.s32 0, %v110
  %v112 = vrot.slane %v107, %v111
  %v114 = vsub.f32 %v99, %v112
  %v115 = vsub.f32 %v104, %v112
  %116 = vst [vmem:[%s3] sm:$0xff] %v114
  %117 = vst [vmem:[%s3 + $0x8] sm:$0xff] %v115
  // Predicated region
  $region14: #{pca_transform.1} parent=0 // pred_check
    _
  $region15: #{pca_transform.1} parent=0 // pred_check_branch
    %119 = sbr.rel (0) target = $region17
  $region16: #{pca_transform.1} parent=0 // pred_region
    _
  $region17: #{pca_transform.1} parent=0 // pred_fallthru
    _
  // Predicated region
  $region18: #{pca_transform.1} parent=0 // pred_check
    _
  $region19: #{pca_transform.1} parent=0 // pred_check_branch
    %121 = sbr.rel (0) target = $region21
  $region20: #{pca_transform.1} parent=0 // pred_region
    _
  $region21: #{pca_transform.1} parent=0 // pred_fallthru
    _

</llo_original>
